<compile_context>
chip_gen: v5e
topology: v5e:2x2
jax: 0.10.0
libtpu: 0.0.40
codegen_flags: <defaults>
</compile_context>

<pallas_src>
import functools

import numpy as np
import jax
import jax.numpy as jnp
from jax import lax
from jax.experimental import pallas as pl
from jax.experimental.pallas import tpu as pltpu


# dot_general dimension numbers for A @ B^T (contract last dim of both) —
# identical form to q @ k^T in the official TPU flash-attention kernel.
_TRANS_B_DIMS = (((1,), (1,)), ((), ()))


def _round_up(x, m):
    return ((x + m - 1) // m) * m


def expcritic_kernel(x_ref, wslab_ref, rows_ref, out_ref, *, d, d_pad, hidden, scale):
    """Fused Critic MLP + ExpCritic transform for one batch tile.

    x_ref     : (TB, D)            input tile (cast to matmul dtype in-kernel)
    wslab_ref : (d_pad + 2H, H)    matmul dtype   [W1 (rows padded to d_pad); W2; W3]
    rows_ref  : (8, H)  f32        rows 0..2 = b1, b2, b3
                                   row  3    = W4^T * log(gamma)
                                   row  4[0] = b4   * log(gamma)
    out_ref   : (1, TB) f32        lane-dense output row (batch on lanes)
    """
    mm = wslab_ref.dtype
    x = x_ref[...].astype(mm)                               # in-kernel cast (no wrapper pass)

    # Static views of the packed weight slab.  W2/W3 start at sublane-aligned
    # offsets (d_pad, d_pad+H); the W1 prefix view [0:d] is a plain subview —
    # any ragged sublane edge is masked by the matmul itself.
    w1 = wslab_ref[0:d, :]
    w2 = wslab_ref[d_pad:d_pad + hidden, :]
    w3 = wslab_ref[d_pad + hidden:d_pad + 2 * hidden, :]

    rows = rows_ref[...]                                    # (8, H) f32
    b1 = rows[0:1, :]
    b2 = rows[1:2, :]
    b3 = rows[2:3, :]
    w4_lg = rows[3:4, :]                                    # (1, H), pre-scaled by log(gamma)
    b4_lg = rows[4:5, 0:1]                                  # (1, 1),  b4 * log(gamma)

    # fc1..fc3 on the MXU (f32 accumulate); bias + ReLU on the VPU in f32.
    h = jnp.maximum(jnp.dot(x, w1, preferred_element_type=jnp.float32) + b1, 0.0)
    h = jnp.maximum(jnp.dot(h.astype(mm), w2, preferred_element_type=jnp.float32) + b2, 0.0)
    h = jnp.maximum(jnp.dot(h.astype(mm), w3, preferred_element_type=jnp.float32) + b3, 0.0)

    # H -> 1 head as (1, H) @ (TB, H)^T -> (1, TB): lane-dense q*log(gamma).
    q_lg = lax.dot_general(w4_lg, h, _TRANS_B_DIMS,
                           preferred_element_type=jnp.float32) + b4_lg

    # ExpCritic transform with folded constants:
    #   -(1 - exp(q*log(gamma))) / (1 - gamma)  ==  scale * (1 - exp(q_lg))
    out_ref[...] = (scale * (1.0 - jnp.exp(q_lg))).astype(out_ref.dtype)


def _x_spec(tb, d, num_tiles):
    """x-tile BlockSpec; request 3-deep buffering on multi-tile grids."""
    idx = lambda i: (i, 0)
    if num_tiles >= 3 and hasattr(pl, "Buffered"):
        try:
            return pl.BlockSpec((tb, d), idx, pipeline_mode=pl.Buffered(3))
        except TypeError:  # older BlockSpec signature — fall back to default 2-deep
            pass
    return pl.BlockSpec((tb, d), idx)


def expcritic_forward(x, params, *, gamma: float, block_b: int = 1024,
                      use_bf16: bool = True, core_parallel: bool = False):
    """ExpCritic forward.  x: (B, D) = concat(obs, goal, action) -> (B, 1) f32.

    core_parallel: set True on v7x to shard the batch grid across both
    TensorCores (pltpu.CORE_PARALLEL); default "parallel" is safe everywhere.
    """
    w1, b1, w2, b2, w3, b3, w4, b4 = params
    B, D = x.shape
    H = w1.shape[1]
    d_pad = _round_up(D, 8)

    log_gamma = float(np.log(gamma))
    scale = float(-1.0 / (1.0 - gamma))
    mm_dtype = jnp.bfloat16 if use_bf16 else jnp.float32

    # One lane-aligned resident weight slab (single DMA): W1 rows padded to a
    # sublane multiple so W2/W3 start at aligned offsets.
    w1_p = jnp.zeros((d_pad, H), jnp.float32).at[:D, :].set(w1.astype(jnp.float32))
    wslab = jnp.concatenate(
        [w1_p, w2.astype(jnp.float32), w3.astype(jnp.float32)], axis=0
    ).astype(mm_dtype)

    # Biases + log(gamma)-scaled head packed into one (8, H) f32 slab; the
    # b4*log(gamma) scalar lives in row 4 (no separate SMEM operand / DMA).
    rows = jnp.zeros((8, H), jnp.float32)
    rows = rows.at[0, :].set(b1.reshape(-1))
    rows = rows.at[1, :].set(b2.reshape(-1))
    rows = rows.at[2, :].set(b3.reshape(-1))
    rows = rows.at[3, :].set(w4.reshape(-1) * log_gamma)
    rows = rows.at[4, 0].set(b4.reshape(-1)[0] * log_gamma)

    # Batch tiling with NO wrapper pad/cast pass over x:
    #   B <= block_b : a single full-extent tile (any B, no alignment needed).
    #   B  > block_b : tiles of block_b rows (multiple of 8); ragged final
    #                  block handled by Pallas boundary masking (rows are
    #                  independent; garbage tail lanes are sliced off below).
    if B <= block_b:
        tb = B
    else:
        tb = max(8, (block_b // 8) * 8)
    num_tiles = (B + tb - 1) // tb

    kernel = functools.partial(expcritic_kernel, d=D, d_pad=d_pad, hidden=H, scale=scale)
    dim_sem = (pltpu.CORE_PARALLEL,) if core_parallel else ("parallel",)

    cost = pl.CostEstimate(
        flops=int(2 * B * (D * H + 2 * H * H + H)),
        transcendentals=int(B),
        bytes_accessed=int(B * D * x.dtype.itemsize + B * 4
                           + wslab.size * wslab.dtype.itemsize + rows.size * 4),
    )

    out = pl.pallas_call(
        kernel,
        out_shape=jax.ShapeDtypeStruct((num_tiles, tb), jnp.float32),
        grid=(num_tiles,),
        in_specs=[
            _x_spec(tb, D, num_tiles),                              # x tile (only per-step DMA)
            pl.BlockSpec((d_pad + 2 * H, H), lambda i: (0, 0)),     # resident weight slab
            pl.BlockSpec((8, H), lambda i: (0, 0)),                 # resident bias/head rows
        ],
        out_specs=pl.BlockSpec((1, tb), lambda i: (i, 0)),          # lane-dense output row
        compiler_params=pltpu.CompilerParams(dimension_semantics=dim_sem),
        cost_estimate=cost,
    )(x, wslab, rows)

    return out.reshape(-1)[:B].reshape(B, 1)


def init_params(key, in_dim, hidden):
    """Deterministic synthetic parameter init (PyTorch Linear-style uniform)."""
    dims = [(in_dim, hidden), (hidden, hidden), (hidden, hidden), (hidden, 1)]
    params = []
    for fan_in, fan_out in dims:
        key, kw, kb = jax.random.split(key, 3)
        bound = 1.0 / np.sqrt(fan_in)
        w = jax.random.uniform(kw, (fan_in, fan_out), jnp.float32, -bound, bound)
        b = jax.random.uniform(kb, (1, fan_out), jnp.float32, -bound, bound)
        params += [w, b]
    return params


def expcritic_reference(x, params, *, gamma: float):
    """Pure-JAX reference for correctness checking."""
    w1, b1, w2, b2, w3, b3, w4, b4 = params
    h = jnp.maximum(x @ w1 + b1, 0.0)
    h = jnp.maximum(h @ w2 + b2, 0.0)
    h = jnp.maximum(h @ w3 + b3, 0.0)
    q = h @ w4 + b4
    return -(1.0 - jnp.exp(q * np.log(gamma))) / (1.0 - gamma)


if __name__ == "__main__":
    OBS, GOAL, ACT = 16, 4, 4            # concat(obs, goal, action) -> D = 24
    D = OBS + GOAL + ACT
    HIDDEN = 128
    GAMMA = 0.98

    key = jax.random.PRNGKey(0)
    key, kp = jax.random.split(key)
    params = init_params(kp, D, HIDDEN)

    # 1) Small batch: single full-extent tile, f32 matmuls, tight tolerance.
    key, kx = jax.random.split(key)
    x_small = jax.random.normal(kx, (8, D), dtype=jnp.float32)
    out = jax.block_until_ready(
        expcritic_forward(x_small, params, gamma=GAMMA, use_bf16=False))
    ref = expcritic_reference(x_small, params, gamma=GAMMA)
    np.testing.assert_allclose(np.asarray(out), np.asarray(ref), rtol=1e-4, atol=1e-4)

    # 2) Odd batch (not a multiple of 8): still a single full-extent tile.
    key, kx = jax.random.split(key)
    x_odd = jax.random.normal(kx, (300, D), dtype=jnp.float32)
    out = jax.block_until_ready(
        expcritic_forward(x_odd, params, gamma=GAMMA, use_bf16=False))
    ref = expcritic_reference(x_odd, params, gamma=GAMMA)
    np.testing.assert_allclose(np.asarray(out), np.asarray(ref), rtol=1e-4, atol=1e-4)

    # 3) Large batch: multi-tile grid (ragged final block) + lane-dense output.
    key, kx = jax.random.split(key)
    x_big = jax.random.normal(kx, (2304, D), dtype=jnp.float32)
    out = jax.block_until_ready(
        expcritic_forward(x_big, params, gamma=GAMMA, use_bf16=False))
    ref = expcritic_reference(x_big, params, gamma=GAMMA)
    np.testing.assert_allclose(np.asarray(out), np.asarray(ref), rtol=1e-4, atol=1e-4)

    # 4) Default path: bf16 matmul operands (v6e/v7x MXU rate), f32 accumulate.
    out_bf16 = jax.block_until_ready(expcritic_forward(x_big, params, gamma=GAMMA))
    np.testing.assert_allclose(np.asarray(out_bf16), np.asarray(ref), rtol=1e-1, atol=1e-1)

    print("KERNEL_OK")
</pallas_src>

<mosaic_0001>
module attributes {stable_mosaic.version = 11 : i64} {
  func.func @expcritic_kernel(%arg0: i32, %arg1: memref<8x24xf32, #tpu.memory_space<vmem>>, %arg2: memref<280x128xf32, #tpu.memory_space<vmem>>, %arg3: memref<8x128xf32, #tpu.memory_space<vmem>>, %arg4: memref<1x8xf32, #tpu.memory_space<vmem>>) attributes {dimension_semantics = [#tpu.dimension_semantics<parallel>], iteration_bounds = array<i64: 1>, scalar_prefetch = 0 : i64, scratch_operands = 0 : i64, tpu.core_type = #tpu.core_type<tc>, window_params = [{transform_indices = @transform_0, window_bounds = array<i64: 8, 24>}, {pipeline_mode = #tpu.pipeline_mode<synchronous>, transform_indices = @transform_1, window_bounds = array<i64: 280, 128>}, {pipeline_mode = #tpu.pipeline_mode<synchronous>, transform_indices = @transform_2, window_bounds = array<i64: 8, 128>}, {transform_indices = @transform_3, window_bounds = array<i64: 1, 8>}]} {
    %c0 = arith.constant 0 : index
    %c0_0 = arith.constant 0 : index
    %0 = vector.load %arg1[%c0, %c0_0] : memref<8x24xf32, #tpu.memory_space<vmem>>, vector<8x24xf32>
    %c0_1 = arith.constant 0 : index
    %c0_2 = arith.constant 0 : index
    %1 = vector.load %arg2[%c0_1, %c0_2] : memref<280x128xf32, #tpu.memory_space<vmem>>, vector<24x128xf32>
    %c24 = arith.constant 24 : index
    %c0_3 = arith.constant 0 : index
    %2 = vector.load %arg2[%c24, %c0_3] : memref<280x128xf32, #tpu.memory_space<vmem>>, vector<128x128xf32>
    %c152 = arith.constant 152 : index
    %c0_4 = arith.constant 0 : index
    %3 = vector.load %arg2[%c152, %c0_4] : memref<280x128xf32, #tpu.memory_space<vmem>>, vector<128x128xf32>
    %c0_5 = arith.constant 0 : index
    %c0_6 = arith.constant 0 : index
    %4 = vector.load %arg3[%c0_5, %c0_6] : memref<8x128xf32, #tpu.memory_space<vmem>>, vector<8x128xf32>
    %5 = vector.extract_strided_slice %4 {offsets = [0, 0], sizes = [1, 128], strides = [1, 1]} : vector<8x128xf32> to vector<1x128xf32>
    %6 = vector.extract_strided_slice %4 {offsets = [1, 0], sizes = [1, 128], strides = [1, 1]} : vector<8x128xf32> to vector<1x128xf32>
    %7 = vector.extract_strided_slice %4 {offsets = [2, 0], sizes = [1, 128], strides = [1, 1]} : vector<8x128xf32> to vector<1x128xf32>
    %8 = vector.extract_strided_slice %4 {offsets = [3, 0], sizes = [1, 128], strides = [1, 1]} : vector<8x128xf32> to vector<1x128xf32>
    %9 = vector.extract_strided_slice %4 {offsets = [4, 0], sizes = [1, 1], strides = [1, 1]} : vector<8x128xf32> to vector<1x1xf32>
    %cst = arith.constant dense<0.000000e+00> : vector<8x128xf32>
    %10 = tpu.matmul %0, %1, %cst {dimension_numbers = #tpu.dot_dimension_numbers<[1], [0], [0], [1], [0, 0, 1, 1], [], []>} : vector<8x24xf32>, vector<24x128xf32>, vector<8x128xf32> -> vector<8x128xf32>
    %11 = vector.broadcast %5 : vector<1x128xf32> to vector<8x128xf32>
    %12 = arith.addf %10, %11 : vector<8x128xf32>
    %cst_7 = arith.constant 0.000000e+00 : f32
    %13 = vector.broadcast %cst_7 : f32 to vector<8x128xf32>
    %14 = arith.maximumf %12, %13 : vector<8x128xf32>
    %cst_8 = arith.constant dense<0.000000e+00> : vector<8x128xf32>
    %15 = tpu.matmul %14, %2, %cst_8 {dimension_numbers = #tpu.dot_dimension_numbers<[1], [0], [0], [1], [0, 0, 1, 1], [], []>} : vector<8x128xf32>, vector<128x128xf32>, vector<8x128xf32> -> vector<8x128xf32>
    %16 = vector.broadcast %6 : vector<1x128xf32> to vector<8x128xf32>
    %17 = arith.addf %15, %16 : vector<8x128xf32>
    %cst_9 = arith.constant 0.000000e+00 : f32
    %18 = vector.broadcast %cst_9 : f32 to vector<8x128xf32>
    %19 = arith.maximumf %17, %18 : vector<8x128xf32>
    %cst_10 = arith.constant dense<0.000000e+00> : vector<8x128xf32>
    %20 = tpu.matmul %19, %3, %cst_10 {dimension_numbers = #tpu.dot_dimension_numbers<[1], [0], [0], [1], [0, 0, 1, 1], [], []>} : vector<8x128xf32>, vector<128x128xf32>, vector<8x128xf32> -> vector<8x128xf32>
    %21 = vector.broadcast %7 : vector<1x128xf32> to vector<8x128xf32>
    %22 = arith.addf %20, %21 : vector<8x128xf32>
    %cst_11 = arith.constant 0.000000e+00 : f32
    %23 = vector.broadcast %cst_11 : f32 to vector<8x128xf32>
    %24 = arith.maximumf %22, %23 : vector<8x128xf32>
    %cst_12 = arith.constant dense<0.000000e+00> : vector<1x8xf32>
    %25 = tpu.matmul %8, %24, %cst_12 {dimension_numbers = #tpu.dot_dimension_numbers<[1], [1], [0], [0], [0, 0, 1, 0], [], []>} : vector<1x128xf32>, vector<8x128xf32>, vector<1x8xf32> -> vector<1x8xf32>
    %26 = vector.broadcast %9 : vector<1x1xf32> to vector<1x8xf32>
    %27 = arith.addf %25, %26 : vector<1x8xf32>
    %28 = math.exp %27 : vector<1x8xf32>
    %cst_13 = arith.constant 1.000000e+00 : f32
    %29 = vector.broadcast %cst_13 : f32 to vector<1x8xf32>
    %30 = arith.subf %29, %28 : vector<1x8xf32>
    %cst_14 = arith.constant -5.000000e+01 : f32
    %31 = vector.broadcast %cst_14 : f32 to vector<1x8xf32>
    %32 = arith.mulf %31, %30 : vector<1x8xf32>
    %c0_15 = arith.constant 0 : index
    %c0_16 = arith.constant 0 : index
    %33 = vector.load %arg4[%c0_15, %c0_16] : memref<1x8xf32, #tpu.memory_space<vmem>>, vector<1x8xf32>
    tpu.vector_store %arg4[%c0_15, %c0_16], %32 {strides = array<i32>} : memref<1x8xf32, #tpu.memory_space<vmem>>, vector<1x8xf32>,
    return
  }
  func.func @transform_0(%arg0: i32) -> (i32, i32) {
    %c0_i32 = arith.constant 0 : i32
    %c0_i32_0 = arith.constant 0 : i32
    return %arg0, %c0_i32 : i32, i32
  }
  func.func @transform_1(%arg0: i32) -> (i32, i32) {
    %c0_i32 = arith.constant 0 : i32
    %c0_i32_0 = arith.constant 0 : i32
    %c0_i32_1 = arith.constant 0 : i32
    return %c0_i32, %c0_i32_0 : i32, i32
  }
  func.func @transform_2(%arg0: i32) -> (i32, i32) {
    %c0_i32 = arith.constant 0 : i32
    %c0_i32_0 = arith.constant 0 : i32
    %c0_i32_1 = arith.constant 0 : i32
    return %c0_i32, %c0_i32_0 : i32, i32
  }
  func.func @transform_3(%arg0: i32) -> (i32, i32) {
    %c0_i32 = arith.constant 0 : i32
    %c0_i32_0 = arith.constant 0 : i32
    return %arg0, %c0_i32 : i32, i32
  }
}

</mosaic_0001>

<llo_original>
// kernel: tpu_custom_call.1
$region0: #{tpu_custom_call.1}
  #allocation0 [shape = 'u32[]', space=smem, size = 0x4, offset = 0x4, fixed_abs, tag = 'smem constant byte address 0x4 - core index']
  #allocation1 [shape = 'u32[72,128]{1,0:T(1,128)}', space=vmem, size = 0x9000, scoped, tag = 'internal scratch']
  %s0 = inlined_call_operand.hbm [shape: f32[8,24], index: 0, kind: input, shape index: {}]
  %s1 = inlined_call_operand.hbm [shape: f32[280,128], index: 1, kind: input, shape index: {}]
  %s2 = inlined_call_operand.hbm [shape: f32[8,128], index: 2, kind: input, shape index: {}]
  %s3 = inlined_call_operand.hbm [shape: f32[1,8], index: 3, kind: output, shape index: {}]
  %s4 = sld [smem:[#allocation0]]
  $region34: #{tpu_custom_call.1} parent=0
    _
  %s6 = ssub.s32 1, %s4
  %s7 = scalar_select 0, %s6, %s4
  $region1: #{tpu_custom_call.1} parent=0
    #allocation2 [shape = 'u8[4096]{0}', space=vmem, size = 0x1000, scoped, tag = 'input window, operand 0, single buffered']
    #allocation3 [shape = 's32[1]{0}', space=sflag, size = 0x4, scoped, tag = 'scoped memory for tpu_custom_call.1']
    #allocation4 [shape = 's32[1]{0}', space=sflag, size = 0x4, scoped, tag = 'scoped memory for tpu_custom_call.1']
    #allocation5 [shape = 'u8[143360]{0}', space=vmem, size = 0x23000, scoped, tag = 'input window, operand 1, single buffered']
    #allocation6 [shape = 's32[1]{0}', space=sflag, size = 0x4, scoped, tag = 'scoped memory for tpu_custom_call.1']
    #allocation7 [shape = 'u8[4096]{0}', space=vmem, size = 0x1000, scoped, tag = 'input window, operand 2, single buffered']
    #allocation8 [shape = 'u8[512]{0}', space=vmem, size = 0x400, scoped, tag = 'output window, operand 0, single buffered']
    %8 = vsyncpa [#allocation3], 0
    %9 = vsyncpa [#allocation6], 0
    %10 = vsyncpa [#allocation4], 0
    // Predicated region
    $region2: #{tpu_custom_call.1} parent=1 // pred_check
      _
    $region3: #{tpu_custom_call.1} parent=1 // pred_check_branch
      %12 = sbr.rel (0) target = $region5
    $region4: #{tpu_custom_call.1} parent=1 // pred_region
      %14 = vsyncadd [#allocation3], 0
      %s16 = sshll.u32 %s0, 4
      %s17 = int_to_ptr.hbm [resolvable:$true] %s16
      %s18 = sshll.u32 [#allocation2], 4
      %s19 = int_to_ptr.vmem [resolvable:$true] %s18
      %21 = dma.hbm_to_vmem [thread:$0]  %s17, 128, %s19, [#allocation3]
    $region5: #{tpu_custom_call.1} parent=1 // pred_fallthru
      _
    // Predicated region
    $region6: #{tpu_custom_call.1} parent=1 // pred_check
      _
    $region7: #{tpu_custom_call.1} parent=1 // pred_check_branch
      %23 = sbr.rel (0) target = $region9
    $region8: #{tpu_custom_call.1} parent=1 // pred_region
      %25 = vsyncadd [#allocation6], 0
      %s26 = sshll.u32 %s1, 4
      %s27 = int_to_ptr.hbm [resolvable:$true] %s26
      %s28 = sshll.u32 [#allocation5], 4
      %s29 = int_to_ptr.vmem [resolvable:$true] %s28
      %34 = dma.hbm_to_vmem [thread:$0]  %s27, 4480, %s29, [#allocation6], 128, 128, 8
    $region9: #{tpu_custom_call.1} parent=1 // pred_fallthru
      _
    // Predicated region
    $region10: #{tpu_custom_call.1} parent=1 // pred_check
      _
    $region11: #{tpu_custom_call.1} parent=1 // pred_check_branch
      %36 = sbr.rel (0) target = $region13
    $region12: #{tpu_custom_call.1} parent=1 // pred_region
      %38 = vsyncadd [#allocation6], 0
      %s40 = sshll.u32 %s2, 4
      %s41 = int_to_ptr.hbm [resolvable:$true] %s40
      %s42 = sshll.u32 [#allocation7], 4
      %s43 = int_to_ptr.vmem [resolvable:$true] %s42
      %45 = dma.hbm_to_vmem [thread:$0]  %s41, 128, %s43, [#allocation6]
    $region13: #{tpu_custom_call.1} parent=1 // pred_fallthru
      _
    // Predicated region
    $region14: #{tpu_custom_call.1} parent=1 // pred_check
      _
    $region15: #{tpu_custom_call.1} parent=1 // pred_check_branch
      %47 = sbr.rel (0) target = $region17
    $region16: #{tpu_custom_call.1} parent=1 // pred_region
      %49 = dma.done [#allocation3], 128
    $region17: #{tpu_custom_call.1} parent=1 // pred_fallthru
      _
    // Predicated region
    $region18: #{tpu_custom_call.1} parent=1 // pred_check
      _
    $region19: #{tpu_custom_call.1} parent=1 // pred_check_branch
      %51 = sbr.rel (0) target = $region21
    $region20: #{tpu_custom_call.1} parent=1 // pred_region
      %53 = dma.done [#allocation6], 4480
    $region21: #{tpu_custom_call.1} parent=1 // pred_fallthru
      _
    // Predicated region
    $region22: #{tpu_custom_call.1} parent=1 // pred_check
      _
    $region23: #{tpu_custom_call.1} parent=1 // pred_check_branch
      %55 = sbr.rel (0) target = $region25
    $region24: #{tpu_custom_call.1} parent=1 // pred_region
      %57 = dma.done [#allocation6], 128
    $region25: #{tpu_custom_call.1} parent=1 // pred_fallthru
      _
    %v58 = vld [vmem:[#allocation2] sm:$0xff]
    %v59 = vld [vmem:[#allocation5] sm:$0xff]
    %v60 = vld [vmem:[#allocation5 + $0x8] sm:$0xff]
    %v61 = vld [vmem:[#allocation5 + $0x10] sm:$0xff]
    %v62 = vld [vmem:[#allocation5 + $0x18] sm:$0xff]
    %v63 = vld [vmem:[#allocation5 + $0x20] sm:$0xff]
    %v64 = vld [vmem:[#allocation5 + $0x28] sm:$0xff]
    %v65 = vld [vmem:[#allocation5 + $0x30] sm:$0xff]
    %v66 = vld [vmem:[#allocation5 + $0x38] sm:$0xff]
    %v67 = vld [vmem:[#allocation5 + $0x40] sm:$0xff]
    %v68 = vld [vmem:[#allocation5 + $0x48] sm:$0xff]
    %v69 = vld [vmem:[#allocation5 + $0x50] sm:$0xff]
    %v70 = vld [vmem:[#allocation5 + $0x58] sm:$0xff]
    %v71 = vld [vmem:[#allocation5 + $0x60] sm:$0xff]
    %v72 = vld [vmem:[#allocation5 + $0x68] sm:$0xff]
    %v73 = vld [vmem:[#allocation5 + $0x70] sm:$0xff]
    %v74 = vld [vmem:[#allocation5 + $0x78] sm:$0xff]
    %v75 = vld [vmem:[#allocation5 + $0x80] sm:$0xff]
    %v76 = vld [vmem:[#allocation5 + $0x88] sm:$0xff]
    %v77 = vld [vmem:[#allocation5 + $0x90] sm:$0xff]
    %v78 = vld [vmem:[#allocation5 + $0x98] sm:$0xff]
    %v79 = vld [vmem:[#allocation5 + $0xa0] sm:$0xff]
    %v80 = vld [vmem:[#allocation5 + $0xa8] sm:$0xff]
    %v81 = vld [vmem:[#allocation5 + $0xb0] sm:$0xff]
    %v82 = vld [vmem:[#allocation5 + $0xb8] sm:$0xff]
    %v83 = vld [vmem:[#allocation5 + $0xc0] sm:$0xff]
    %v84 = vld [vmem:[#allocation5 + $0xc8] sm:$0xff]
    %v85 = vld [vmem:[#allocation5 + $0xd0] sm:$0xff]
    %v86 = vld [vmem:[#allocation5 + $0xd8] sm:$0xff]
    %v87 = vld [vmem:[#allocation5 + $0xe0] sm:$0xff]
    %v88 = vld [vmem:[#allocation5 + $0xe8] sm:$0xff]
    %v89 = vld [vmem:[#allocation5 + $0xf0] sm:$0xff]
    %v90 = vld [vmem:[#allocation5 + $0xf8] sm:$0xff]
    %v91 = vld [vmem:[#allocation5 + $0x100] sm:$0xff]
    %v92 = vld [vmem:[#allocation5 + $0x108] sm:$0xff]
    %v93 = vld [vmem:[#allocation5 + $0x110] sm:$0xff]
    %v94 = vld [vmem:[#allocation7] sm:$0xff]
    %v95 = vperm.slane %v94, 0
    %vm96 = vcmask 195584
    %v98 = vsel %vm96, %v58, 0
    %100 = vmatpush.msra.mxu0 0.0
    %101 = vmatpush.msra.mxu0 0.0
    %102 = vmatpush.msra.mxu0 0.0
    %103 = vmatpush.msra.mxu0 0.0
    %104 = vmatpush.msra.mxu0 0.0
    %105 = vmatpush.msra.mxu0 0.0
    %106 = vmatpush.msra.mxu0 0.0
    %107 = vmatpush.msra.mxu0 0.0
    %108 = vmatpush.msra.mxu0 0.0
    %109 = vmatpush.msra.mxu0 0.0
    %110 = vmatpush.msra.mxu0 0.0
    %111 = vmatpush.msra.mxu0 0.0
    %112 = vmatpush.msra.mxu0 0.0
    %113 = vmatpush.msra.mxu0 %v61
    %114 = vmatpush.msra.mxu0 %v60
    %115 = vmatpush.msra.mxu0 %v59
    %116 = vmatmul.f32.gmra.mxu0 %v98
    %v117 = vpop.f32.mrf.mxu0
    %v118 = vadd.f32 %v95, %v117
    %119 = vdwg.mxu0
    %v120 = vmax.f32 %v118, 0.0
    %v121 = vperm.slane %v94, 1
    %122 = vmatpush.msra.mxu0 %v77
    %123 = vmatpush.msra.mxu0 %v76
    %124 = vmatpush.msra.mxu0 %v75
    %125 = vmatpush.msra.mxu0 %v74
    %126 = vmatpush.msra.mxu0 %v73
    %127 = vmatpush.msra.mxu0 %v72
    %128 = vmatpush.msra.mxu0 %v71
    %129 = vmatpush.msra.mxu0 %v70
    %130 = vmatpush.msra.mxu0 %v69
    %131 = vmatpush.msra.mxu0 %v68
    %132 = vmatpush.msra.mxu0 %v67
    %133 = vmatpush.msra.mxu0 %v66
    %134 = vmatpush.msra.mxu0 %v65
    %135 = vmatpush.msra.mxu0 %v64
    %136 = vmatpush.msra.mxu0 %v63
    %137 = vmatpush.msra.mxu0 %v62
    %138 = vmatmul.f32.gmra.mxu0 %v120
    %v139 = vpop.f32.mrf.mxu0
    %v140 = vadd.f32 %v121, %v139
    %141 = vdwg.mxu0
    %v142 = vmax.f32 %v140, 0.0
    %v143 = vperm.slane %v94, 2
    %144 = vmatpush.msra.mxu0 %v93
    %145 = vmatpush.msra.mxu0 %v92
    %146 = vmatpush.msra.mxu0 %v91
    %147 = vmatpush.msra.mxu0 %v90
    %148 = vmatpush.msra.mxu0 %v89
    %149 = vmatpush.msra.mxu0 %v88
    %150 = vmatpush.msra.mxu0 %v87
    %151 = vmatpush.msra.mxu0 %v86
    %152 = vmatpush.msra.mxu0 %v85
    %153 = vmatpush.msra.mxu0 %v84
    %154 = vmatpush.msra.mxu0 %v83
    %155 = vmatpush.msra.mxu0 %v82
    %156 = vmatpush.msra.mxu0 %v81
    %157 = vmatpush.msra.mxu0 %v80
    %158 = vmatpush.msra.mxu0 %v79
    %159 = vmatpush.msra.mxu0 %v78
    %160 = vmatmul.f32.gmra.mxu0 %v142
    %v161 = vpop.f32.mrf.mxu0
    %v162 = vadd.f32 %v143, %v161
    %163 = vdwg.mxu0
    %v164 = vmax.f32 %v162, 0.0
    %166 = vset.pattern.permute.xlu0 0
    %167 = vperm.xlu0 %166, %v94
    %v168 = vpop.permute.xlu0 %167
    %v169 = vrot.slane %v94, 3
    %v171 = vrot.slane %v168, 4
    %173 = vmatpush.xpose.msra.mxu0 0.0
    %174 = vmatpush.xpose.msra.mxu0 0.0
    %175 = vmatpush.xpose.msra.mxu0 0.0
    %176 = vmatpush.xpose.msra.mxu0 0.0
    %177 = vmatpush.xpose.msra.mxu0 0.0
    %178 = vmatpush.xpose.msra.mxu0 0.0
    %179 = vmatpush.xpose.msra.mxu0 0.0
    %180 = vmatpush.xpose.msra.mxu0 0.0
    %181 = vmatpush.xpose.msra.mxu0 0.0
    %182 = vmatpush.xpose.msra.mxu0 0.0
    %183 = vmatpush.xpose.msra.mxu0 0.0
    %184 = vmatpush.xpose.msra.mxu0 0.0
    %185 = vmatpush.xpose.msra.mxu0 0.0
    %186 = vmatpush.xpose.msra.mxu0 0.0
    %187 = vmatpush.xpose.msra.mxu0 0.0
    %188 = vmatpush.xpose.msra.mxu0 %v164
    %189 = vmatmul.f32.gmra.mxu0 %v169
    %v190 = vpop.f32.mrf.mxu0
    %v191 = vadd.f32 %v171, %v190
    %192 = vdwg.mxu0
    %v193 = vmul.f32 %v191, 1.442695
    %v194 = vpow.pop %v193
    %v195 = vsub.f32 1.0, %v194
    %v196 = vmul.f32 %v195, -50.0
    %vm197 = vcmask 57344
    %198 = vst.msk [vmem:[#allocation8] sm:$0x1] %vm197, %v196
    // Predicated region
    $region26: #{tpu_custom_call.1} parent=1 // pred_check
      _
    $region27: #{tpu_custom_call.1} parent=1 // pred_check_branch
      %200 = sbr.rel (0) target = $region29
    $region28: #{tpu_custom_call.1} parent=1 // pred_region
      %202 = vsyncadd [#allocation4], 0
      %s204 = sshll.u32 [#allocation8], 4
      %s205 = int_to_ptr.vmem [resolvable:$true] %s204
      %s206 = sshll.u32 %s3, 4
      %s207 = int_to_ptr.hbm [resolvable:$true] %s206
      %209 = dma.vmem_to_hbm [thread:$0]  %s205, 16, %s207, [#allocation4]
    $region29: #{tpu_custom_call.1} parent=1 // pred_fallthru
      _
    // Predicated region
    $region30: #{tpu_custom_call.1} parent=1 // pred_check
      _
    $region31: #{tpu_custom_call.1} parent=1 // pred_check_branch
      %211 = sbr.rel (0) target = $region33
    $region32: #{tpu_custom_call.1} parent=1 // pred_region
      %213 = dma.done [#allocation4], 16
    $region33: #{tpu_custom_call.1} parent=1 // pred_fallthru
      _
    %214 = vsyncpa [#allocation3], 1
    %215 = vsyncpa [#allocation6], 1
    %216 = vsyncpa [#allocation4], 1

</llo_original>
